<compile_context>
chip_gen: v7x
topology: tpu7x:2x2x1
jax: 0.10.0
libtpu: 0.0.40
codegen_flags: <defaults>
</compile_context>

<pallas_src>
import functools

import jax
import jax.numpy as jnp
from jax.experimental import pallas as pl
from jax.experimental.pallas import tpu as pltpu

EPS = 1e-5     # nn.LayerNorm default eps
LANES = 128    # TPU lane width


def _round_up(v, m):
    return (v + m - 1) // m * m


def _vmem_capacity_bytes():
    try:
        return int(pltpu.get_tpu_info().vmem_capacity_bytes)
    except Exception:
        return 64 * 1024 * 1024  # v7x per-TC VMEM: safe lower bound everywhere


def _resident_spec(shape):
    """Constant-index (VMEM-resident) BlockSpec, single-buffered when supported."""
    index_map = lambda i: (0,) * len(shape)
    if hasattr(pl, "Buffered"):
        try:
            return pl.BlockSpec(shape, index_map, pipeline_mode=pl.Buffered(1))
        except Exception:  # older Pallas signature without pipeline_mode
            pass
    return pl.BlockSpec(shape, index_map)


def _layernorm_tanh(h, gamma, beta, inv_d):
    # Two-pass LayerNorm (matches torch.nn.LayerNorm, avoids E[x^2]-mu^2
    # cancellation) fused with tanh.  Reductions hit the XLU, rsqrt/tanh the
    # EUP, so this sits in otherwise-idle VLIW slots.
    mu = jnp.sum(h, axis=-1, keepdims=True) * inv_d
    hc = h - mu
    var = jnp.maximum(jnp.sum(hc * hc, axis=-1, keepdims=True) * inv_d, 0.0)
    return jnp.tanh(hc * jax.lax.rsqrt(var + EPS) * gamma + beta)


def _linear_down_up_kernel(
    x_ref,
    w1_ref, b1_ref, g1_ref, bt1_ref,
    w2_ref, b2_ref, g2_ref, bt2_ref,
    w3_ref, b3_ref, g3_ref, bt3_ref,
    w4_ref, b4_ref,
    out_ref,
    *, narrow_out,
):
    # Layer 1: x streamed as bf16, fed straight into the MXU (f32 accumulate).
    h = jnp.dot(x_ref[...], w1_ref[...],
                preferred_element_type=jnp.float32) + b1_ref[...]
    h = _layernorm_tanh(h, g1_ref[...], bt1_ref[...], 1.0 / w1_ref.shape[1])

    for w_ref, b_ref, g_ref, bt_ref in (
        (w2_ref, b2_ref, g2_ref, bt2_ref),
        (w3_ref, b3_ref, g3_ref, bt3_ref),
    ):
        h = jnp.dot(h.astype(jnp.bfloat16), w_ref[...],
                    preferred_element_type=jnp.float32) + b_ref[...]
        h = _layernorm_tanh(h, g_ref[...], bt_ref[...], 1.0 / w_ref.shape[1])

    hb = h.astype(jnp.bfloat16)
    if narrow_out:
        # w4_ref: (OUT, F/8) bf16 -> (OUT, TM) lane-dense result; writeback is
        # OUT*4 bytes/row instead of a 128-lane padded slab.
        r = jax.lax.dot_general(w4_ref[...], hb, (((1,), (1,)), ((), ())),
                                preferred_element_type=jnp.float32)
        out_ref[...] = jnp.tanh(r + b4_ref[...]).reshape(out_ref.shape)
    else:
        # Lane-padded wide output (out_features >= 128): unmasked vst.
        r = jnp.dot(hb, w4_ref[...],
                    preferred_element_type=jnp.float32) + b4_ref[...]
        out_ref[...] = jnp.tanh(r)


def _choose_tm(n_rows, in_features, out_row_bytes, resident_bytes, vmem_capacity):
    """Row-tile size: multiple of 16 (bf16 packing), 128 for large N."""
    if n_rows <= 256:
        return _round_up(n_rows, 16)
    # bytes per row held in VMEM per grid step:
    #   double-buffered bf16 x tile + double-buffered output tile
    per_row = 2 * in_features * 2 + 2 * out_row_bytes
    budget = int(0.70 * vmem_capacity)                # leave Mosaic headroom
    avail = max(budget - resident_bytes, 2 * 1024 * 1024)
    tm_vmem = max(128, min(2048, (avail // per_row) // 128 * 128))
    # keep >= ~8 grid steps: shards rows across 2 TCs on v7x and gives the
    # DMA/compute pipeline depth (pure win on 1-TC v5e/v6e too).
    tm_grid = max(128, _round_up((n_rows + 7) // 8, 128))
    return min(tm_vmem, tm_grid, _round_up(n_rows, 128))


def prepare_params(params):
    """One-time conversion of f32 params to the kernel layout.

    Call once outside the hot loop: bf16 weights for the MXU, f32 biases / LN
    params, and the out layer either transposed (narrow, out_features < 128)
    or lane-padded (wide).
    """
    prepared = {}
    for i in (1, 2, 3):
        prepared[f"w{i}"] = params[f"w{i}"].astype(jnp.bfloat16)
        prepared[f"b{i}"] = params[f"b{i}"].astype(jnp.float32)
        prepared[f"g{i}"] = params[f"g{i}"].astype(jnp.float32)
        prepared[f"bt{i}"] = params[f"bt{i}"].astype(jnp.float32)
    out_features = params["w4"].shape[1]
    if out_features < LANES:
        prepared["w4t"] = params["w4"].T.astype(jnp.bfloat16)            # (OUT, F/8)
        prepared["b4t"] = params["b4"].reshape(out_features, 1).astype(jnp.float32)
    else:
        out_pad = _round_up(out_features, LANES)
        prepared["w4"] = jnp.pad(
            params["w4"], ((0, 0), (0, out_pad - out_features))).astype(jnp.bfloat16)
        prepared["b4"] = jnp.pad(
            params["b4"], ((0, 0), (0, out_pad - out_features))).astype(jnp.float32)
    return prepared


def linear_down_up_block(x, prepared):
    """x: (B, S, F) float32. prepared: output of prepare_params.

    Returns (representations, logits) matching the PyTorch ModelOutput fields.
    """
    B, S, F = x.shape
    N = B * S
    narrow = "w4t" in prepared
    out_features = prepared["w4t"].shape[0] if narrow else prepared["w4"].shape[1]
    out_pad = out_features if narrow else _round_up(out_features, LANES)

    resident_bytes = sum(int(a.size) * a.dtype.itemsize for a in prepared.values())
    out_row_bytes = (out_features if narrow else out_pad) * 4
    capacity = _vmem_capacity_bytes()

    tm = _choose_tm(N, F, out_row_bytes, resident_bytes, capacity)
    n_pad = _round_up(N, tm)
    grid = n_pad // tm

    # Activation stream in bf16 (halves HBM traffic / VMEM tile vs f32).
    x2d = x.reshape(N, F).astype(jnp.bfloat16)
    if n_pad != N:
        x2d = jnp.pad(x2d, ((0, n_pad - N), (0, 0)))

    weight_args = (
        prepared["w1"], prepared["b1"], prepared["g1"], prepared["bt1"],
        prepared["w2"], prepared["b2"], prepared["g2"], prepared["bt2"],
        prepared["w3"], prepared["b3"], prepared["g3"], prepared["bt3"],
    )
    if narrow:
        weight_args += (prepared["w4t"], prepared["b4t"])
        out_shape = jax.ShapeDtypeStruct((grid, out_features, tm), jnp.float32)
        out_specs = pl.BlockSpec((1, out_features, tm), lambda i: (i, 0, 0))
    else:
        weight_args += (prepared["w4"], prepared["b4"])
        out_shape = jax.ShapeDtypeStruct((n_pad, out_pad), jnp.float32)
        out_specs = pl.BlockSpec((tm, out_pad), lambda i: (i, 0))

    in_specs = [pl.BlockSpec((tm, F), lambda i: (i, 0))] + [
        _resident_spec(a.shape) for a in weight_args
    ]

    # Per-call VMEM limit: resident params (single-buffered) + pipelined
    # activation/output tiles + ~20% slack, kept below physical capacity.
    per_step = tm * (2 * F * 2 + 2 * out_row_bytes)
    vmem_limit = int(1.2 * (resident_bytes + per_step)) + (4 << 20)
    vmem_limit = max(32 << 20, min(vmem_limit, int(0.9 * capacity)))

    kernel = functools.partial(_linear_down_up_kernel, narrow_out=narrow)
    out = pl.pallas_call(
        kernel,
        out_shape=out_shape,
        grid_spec=pltpu.PrefetchScalarGridSpec(
            num_scalar_prefetch=0,
            grid=(grid,),
            in_specs=in_specs,
            out_specs=out_specs,
        ),
        compiler_params=pltpu.CompilerParams(
            dimension_semantics=("parallel",),   # dual-TC row sharding on v7x
            vmem_limit_bytes=vmem_limit,
        ),
    )(x2d, *weight_args)

    if narrow:
        logits = out.transpose(0, 2, 1).reshape(n_pad, out_features)[:N]
    else:
        logits = out[:N, :out_features]
    return x, logits.reshape(B, S, out_features)  # (representations, logits)


def _xavier_uniform(key, fan_in, fan_out, gain):
    bound = gain * jnp.sqrt(6.0 / (fan_in + fan_out))
    # stored as (in, out) for right-multiplication; same distribution as
    # torch's (out, in) weight since the xavier bound is symmetric in fan in/out.
    return jax.random.uniform(
        key, (fan_in, fan_out), minval=-bound, maxval=bound, dtype=jnp.float32
    )


def init_params(key, in_features, out_features=1, num_layers=3, down=True):
    gain = jnp.sqrt(2.0)  # nn.init.calculate_gain('relu')
    fdim = lambda k: (in_features // (2 ** k)) if down else (in_features * (2 ** k))
    params = {}
    keys = jax.random.split(key, num_layers + 1)
    for i in range(num_layers):
        d_in, d_out = fdim(i), fdim(i + 1)
        params[f"w{i+1}"] = _xavier_uniform(keys[i], d_in, d_out, gain)
        params[f"b{i+1}"] = jnp.zeros((1, d_out), jnp.float32)   # Linear bias (zero-init)
        params[f"g{i+1}"] = jnp.ones((1, d_out), jnp.float32)    # LayerNorm weight
        params[f"bt{i+1}"] = jnp.zeros((1, d_out), jnp.float32)  # LayerNorm bias
    d_last = fdim(num_layers)
    params["w4"] = _xavier_uniform(keys[num_layers], d_last, out_features, gain)
    params["b4"] = jnp.zeros((1, out_features), jnp.float32)
    return params


def _reference(x, params, num_layers=3, bf16_matmul=True):
    """Pure-JAX reference. bf16_matmul=True mimics the kernel's MXU casts."""
    cast = (lambda a: a.astype(jnp.bfloat16)) if bf16_matmul else (lambda a: a)
    h = x.reshape(-1, x.shape[-1]).astype(jnp.float32)
    for i in range(num_layers):
        h = jnp.dot(cast(h), cast(params[f"w{i+1}"]),
                    preferred_element_type=jnp.float32) + params[f"b{i+1}"]
        mu = jnp.mean(h, axis=-1, keepdims=True)
        hc = h - mu
        var = jnp.mean(hc * hc, axis=-1, keepdims=True)
        h = jnp.tanh(hc * jax.lax.rsqrt(var + EPS)
                     * params[f"g{i+1}"] + params[f"bt{i+1}"])
    h = jnp.tanh(jnp.dot(cast(h), cast(params["w4"]),
                         preferred_element_type=jnp.float32) + params["b4"])
    return h.reshape(x.shape[0], x.shape[1], -1)


if __name__ == "__main__":
    key = jax.random.PRNGKey(0)
    k_x, k_p, k_x2, k_p2, k_x3, k_p3 = jax.random.split(key, 6)

    fwd = jax.jit(linear_down_up_block)

    # Case 1: tiny demo shape, narrow-output (out_features=1), single grid step.
    B, S, F = 2, 8, 32
    x = jax.random.normal(k_x, (B, S, F), dtype=jnp.float32)
    params = init_params(k_p, in_features=F, out_features=1)
    prepared = prepare_params(params)
    reps, logits = fwd(x, prepared)
    jax.block_until_ready((reps, logits))
    ref = _reference(x, params)
    assert logits.shape == (B, S, 1)
    assert reps.shape == x.shape
    assert jnp.allclose(reps, x)
    assert jnp.allclose(logits, ref, atol=2e-2, rtol=2e-2), \
        float(jnp.max(jnp.abs(logits - ref)))

    # Case 2: multi-tile grid with row padding (pipelined path, narrow output).
    B2, S2, F2 = 2, 520, 256   # N=1040 -> TM=256, grid=5, 240 padded rows
    x2 = jax.random.normal(k_x2, (B2, S2, F2), dtype=jnp.float32)
    params2 = init_params(k_p2, in_features=F2, out_features=1)
    prepared2 = prepare_params(params2)
    reps2, logits2 = fwd(x2, prepared2)
    jax.block_until_ready((reps2, logits2))
    ref2 = _reference(x2, params2)
    assert logits2.shape == (B2, S2, 1)
    assert jnp.allclose(reps2, x2)
    assert jnp.allclose(logits2, ref2, atol=2e-2, rtol=2e-2), \
        float(jnp.max(jnp.abs(logits2 - ref2)))

    # Case 3: wide-output (lane-padded MXU) path, out_features=128.
    B3, S3, F3 = 2, 8, 64
    x3 = jax.random.normal(k_x3, (B3, S3, F3), dtype=jnp.float32)
    params3 = init_params(k_p3, in_features=F3, out_features=128)
    prepared3 = prepare_params(params3)
    reps3, logits3 = fwd(x3, prepared3)
    jax.block_until_ready((reps3, logits3))
    ref3 = _reference(x3, params3)
    assert logits3.shape == (B3, S3, 128)
    assert jnp.allclose(reps3, x3)
    assert jnp.allclose(logits3, ref3, atol=2e-2, rtol=2e-2), \
        float(jnp.max(jnp.abs(logits3 - ref3)))

    print("KERNEL_OK")
</pallas_src>

<mosaic_0001>
module attributes {stable_mosaic.version = 11 : i64} {
  func.func @_linear_down_up_kernel(%arg0: i32, %arg1: memref<16x32xbf16, #tpu.memory_space<vmem>>, %arg2: memref<32x16xbf16, #tpu.memory_space<vmem>>, %arg3: memref<1x16xf32, #tpu.memory_space<vmem>>, %arg4: memref<1x16xf32, #tpu.memory_space<vmem>>, %arg5: memref<1x16xf32, #tpu.memory_space<vmem>>, %arg6: memref<16x8xbf16, #tpu.memory_space<vmem>>, %arg7: memref<1x8xf32, #tpu.memory_space<vmem>>, %arg8: memref<1x8xf32, #tpu.memory_space<vmem>>, %arg9: memref<1x8xf32, #tpu.memory_space<vmem>>, %arg10: memref<8x4xbf16, #tpu.memory_space<vmem>>, %arg11: memref<1x4xf32, #tpu.memory_space<vmem>>, %arg12: memref<1x4xf32, #tpu.memory_space<vmem>>, %arg13: memref<1x4xf32, #tpu.memory_space<vmem>>, %arg14: memref<1x4xbf16, #tpu.memory_space<vmem>>, %arg15: memref<1x1xf32, #tpu.memory_space<vmem>>, %arg16: memref<1x1x16xf32, #tpu.memory_space<vmem>>) attributes {dimension_semantics = [#tpu.dimension_semantics<parallel>], iteration_bounds = array<i64: 1>, scalar_prefetch = 0 : i64, scratch_operands = 0 : i64, tpu.core_type = #tpu.core_type<tc>, window_params = [{transform_indices = @transform_0, window_bounds = array<i64: 16, 32>}, {pipeline_mode = #tpu.pipeline_mode<synchronous>, transform_indices = @transform_1, window_bounds = array<i64: 32, 16>}, {pipeline_mode = #tpu.pipeline_mode<synchronous>, transform_indices = @transform_2, window_bounds = array<i64: 1, 16>}, {pipeline_mode = #tpu.pipeline_mode<synchronous>, transform_indices = @transform_3, window_bounds = array<i64: 1, 16>}, {pipeline_mode = #tpu.pipeline_mode<synchronous>, transform_indices = @transform_4, window_bounds = array<i64: 1, 16>}, {pipeline_mode = #tpu.pipeline_mode<synchronous>, transform_indices = @transform_5, window_bounds = array<i64: 16, 8>}, {pipeline_mode = #tpu.pipeline_mode<synchronous>, transform_indices = @transform_6, window_bounds = array<i64: 1, 8>}, {pipeline_mode = #tpu.pipeline_mode<synchronous>, transform_indices = @transform_7, window_bounds = array<i64: 1, 8>}, {pipeline_mode = #tpu.pipeline_mode<synchronous>, transform_indices = @transform_8, window_bounds = array<i64: 1, 8>}, {pipeline_mode = #tpu.pipeline_mode<synchronous>, transform_indices = @transform_9, window_bounds = array<i64: 8, 4>}, {pipeline_mode = #tpu.pipeline_mode<synchronous>, transform_indices = @transform_10, window_bounds = array<i64: 1, 4>}, {pipeline_mode = #tpu.pipeline_mode<synchronous>, transform_indices = @transform_11, window_bounds = array<i64: 1, 4>}, {pipeline_mode = #tpu.pipeline_mode<synchronous>, transform_indices = @transform_12, window_bounds = array<i64: 1, 4>}, {pipeline_mode = #tpu.pipeline_mode<synchronous>, transform_indices = @transform_13, window_bounds = array<i64: 1, 4>}, {pipeline_mode = #tpu.pipeline_mode<synchronous>, transform_indices = @transform_14, window_bounds = array<i64: 1, 1>}, {transform_indices = @transform_15, window_bounds = array<i64: 1, 1, 16>}]} {
    %c0 = arith.constant 0 : index
    %c0_0 = arith.constant 0 : index
    %0 = vector.load %arg1[%c0, %c0_0] : memref<16x32xbf16, #tpu.memory_space<vmem>>, vector<16x32xbf16>
    %c0_1 = arith.constant 0 : index
    %c0_2 = arith.constant 0 : index
    %1 = vector.load %arg2[%c0_1, %c0_2] : memref<32x16xbf16, #tpu.memory_space<vmem>>, vector<32x16xbf16>
    %cst = arith.constant dense<0.000000e+00> : vector<16x16xf32>
    %2 = tpu.matmul %0, %1, %cst {dimension_numbers = #tpu.dot_dimension_numbers<[1], [0], [0], [1], [0, 0, 1, 1], [], []>} : vector<16x32xbf16>, vector<32x16xbf16>, vector<16x16xf32> -> vector<16x16xf32>
    %c0_3 = arith.constant 0 : index
    %c0_4 = arith.constant 0 : index
    %3 = vector.load %arg3[%c0_3, %c0_4] : memref<1x16xf32, #tpu.memory_space<vmem>>, vector<1x16xf32>
    %4 = vector.broadcast %3 : vector<1x16xf32> to vector<16x16xf32>
    %5 = arith.addf %2, %4 : vector<16x16xf32>
    %c0_5 = arith.constant 0 : index
    %c0_6 = arith.constant 0 : index
    %6 = vector.load %arg4[%c0_5, %c0_6] : memref<1x16xf32, #tpu.memory_space<vmem>>, vector<1x16xf32>
    %c0_7 = arith.constant 0 : index
    %c0_8 = arith.constant 0 : index
    %7 = vector.load %arg5[%c0_7, %c0_8] : memref<1x16xf32, #tpu.memory_space<vmem>>, vector<1x16xf32>
    %cst_9 = arith.constant dense<0.000000e+00> : vector<16xf32>
    %8 = vector.multi_reduction <add>, %5, %cst_9 [1] : vector<16x16xf32> to vector<16xf32>
    %9 = vector.shape_cast %8 : vector<16xf32> to vector<16x1xf32>
    %cst_10 = arith.constant 6.250000e-02 : f32
    %10 = vector.broadcast %cst_10 : f32 to vector<16x1xf32>
    %11 = arith.mulf %9, %10 : vector<16x1xf32>
    %12 = vector.broadcast %11 : vector<16x1xf32> to vector<16x16xf32>
    %13 = arith.subf %5, %12 : vector<16x16xf32>
    %14 = arith.mulf %13, %13 : vector<16x16xf32>
    %cst_11 = arith.constant dense<0.000000e+00> : vector<16xf32>
    %15 = vector.multi_reduction <add>, %14, %cst_11 [1] : vector<16x16xf32> to vector<16xf32>
    %16 = vector.shape_cast %15 : vector<16xf32> to vector<16x1xf32>
    %cst_12 = arith.constant 6.250000e-02 : f32
    %17 = vector.broadcast %cst_12 : f32 to vector<16x1xf32>
    %18 = arith.mulf %16, %17 : vector<16x1xf32>
    %cst_13 = arith.constant 0.000000e+00 : f32
    %19 = vector.broadcast %cst_13 : f32 to vector<16x1xf32>
    %20 = arith.maximumf %18, %19 : vector<16x1xf32>
    %cst_14 = arith.constant 9.99999974E-6 : f32
    %21 = vector.broadcast %cst_14 : f32 to vector<16x1xf32>
    %22 = arith.addf %20, %21 : vector<16x1xf32>
    %23 = math.rsqrt %22 : vector<16x1xf32>
    %24 = vector.broadcast %23 : vector<16x1xf32> to vector<16x16xf32>
    %25 = arith.mulf %13, %24 : vector<16x16xf32>
    %26 = vector.broadcast %6 : vector<1x16xf32> to vector<16x16xf32>
    %27 = arith.mulf %25, %26 : vector<16x16xf32>
    %28 = vector.broadcast %7 : vector<1x16xf32> to vector<16x16xf32>
    %29 = arith.addf %27, %28 : vector<16x16xf32>
    %30 = math.tanh %29 : vector<16x16xf32>
    %31 = arith.truncf %30 : vector<16x16xf32> to vector<16x16xbf16>
    %c0_15 = arith.constant 0 : index
    %c0_16 = arith.constant 0 : index
    %32 = vector.load %arg6[%c0_15, %c0_16] : memref<16x8xbf16, #tpu.memory_space<vmem>>, vector<16x8xbf16>
    %cst_17 = arith.constant dense<0.000000e+00> : vector<16x8xf32>
    %33 = tpu.matmul %31, %32, %cst_17 {dimension_numbers = #tpu.dot_dimension_numbers<[1], [0], [0], [1], [0, 0, 1, 1], [], []>} : vector<16x16xbf16>, vector<16x8xbf16>, vector<16x8xf32> -> vector<16x8xf32>
    %c0_18 = arith.constant 0 : index
    %c0_19 = arith.constant 0 : index
    %34 = vector.load %arg7[%c0_18, %c0_19] : memref<1x8xf32, #tpu.memory_space<vmem>>, vector<1x8xf32>
    %35 = vector.broadcast %34 : vector<1x8xf32> to vector<16x8xf32>
    %36 = arith.addf %33, %35 : vector<16x8xf32>
    %c0_20 = arith.constant 0 : index
    %c0_21 = arith.constant 0 : index
    %37 = vector.load %arg8[%c0_20, %c0_21] : memref<1x8xf32, #tpu.memory_space<vmem>>, vector<1x8xf32>
    %c0_22 = arith.constant 0 : index
    %c0_23 = arith.constant 0 : index
    %38 = vector.load %arg9[%c0_22, %c0_23] : memref<1x8xf32, #tpu.memory_space<vmem>>, vector<1x8xf32>
    %cst_24 = arith.constant dense<0.000000e+00> : vector<16xf32>
    %39 = vector.multi_reduction <add>, %36, %cst_24 [1] : vector<16x8xf32> to vector<16xf32>
    %40 = vector.shape_cast %39 : vector<16xf32> to vector<16x1xf32>
    %cst_25 = arith.constant 1.250000e-01 : f32
    %41 = vector.broadcast %cst_25 : f32 to vector<16x1xf32>
    %42 = arith.mulf %40, %41 : vector<16x1xf32>
    %43 = vector.broadcast %42 : vector<16x1xf32> to vector<16x8xf32>
    %44 = arith.subf %36, %43 : vector<16x8xf32>
    %45 = arith.mulf %44, %44 : vector<16x8xf32>
    %cst_26 = arith.constant dense<0.000000e+00> : vector<16xf32>
    %46 = vector.multi_reduction <add>, %45, %cst_26 [1] : vector<16x8xf32> to vector<16xf32>
    %47 = vector.shape_cast %46 : vector<16xf32> to vector<16x1xf32>
    %cst_27 = arith.constant 1.250000e-01 : f32
    %48 = vector.broadcast %cst_27 : f32 to vector<16x1xf32>
    %49 = arith.mulf %47, %48 : vector<16x1xf32>
    %cst_28 = arith.constant 0.000000e+00 : f32
    %50 = vector.broadcast %cst_28 : f32 to vector<16x1xf32>
    %51 = arith.maximumf %49, %50 : vector<16x1xf32>
    %cst_29 = arith.constant 9.99999974E-6 : f32
    %52 = vector.broadcast %cst_29 : f32 to vector<16x1xf32>
    %53 = arith.addf %51, %52 : vector<16x1xf32>
    %54 = math.rsqrt %53 : vector<16x1xf32>
    %55 = vector.broadcast %54 : vector<16x1xf32> to vector<16x8xf32>
    %56 = arith.mulf %44, %55 : vector<16x8xf32>
    %57 = vector.broadcast %37 : vector<1x8xf32> to vector<16x8xf32>
    %58 = arith.mulf %56, %57 : vector<16x8xf32>
    %59 = vector.broadcast %38 : vector<1x8xf32> to vector<16x8xf32>
    %60 = arith.addf %58, %59 : vector<16x8xf32>
    %61 = math.tanh %60 : vector<16x8xf32>
    %62 = arith.truncf %61 : vector<16x8xf32> to vector<16x8xbf16>
    %c0_30 = arith.constant 0 : index
    %c0_31 = arith.constant 0 : index
    %63 = vector.load %arg10[%c0_30, %c0_31] : memref<8x4xbf16, #tpu.memory_space<vmem>>, vector<8x4xbf16>
    %cst_32 = arith.constant dense<0.000000e+00> : vector<16x4xf32>
    %64 = tpu.matmul %62, %63, %cst_32 {dimension_numbers = #tpu.dot_dimension_numbers<[1], [0], [0], [1], [0, 0, 1, 1], [], []>} : vector<16x8xbf16>, vector<8x4xbf16>, vector<16x4xf32> -> vector<16x4xf32>
    %c0_33 = arith.constant 0 : index
    %c0_34 = arith.constant 0 : index
    %65 = vector.load %arg11[%c0_33, %c0_34] : memref<1x4xf32, #tpu.memory_space<vmem>>, vector<1x4xf32>
    %66 = vector.broadcast %65 : vector<1x4xf32> to vector<16x4xf32>
    %67 = arith.addf %64, %66 : vector<16x4xf32>
    %c0_35 = arith.constant 0 : index
    %c0_36 = arith.constant 0 : index
    %68 = vector.load %arg12[%c0_35, %c0_36] : memref<1x4xf32, #tpu.memory_space<vmem>>, vector<1x4xf32>
    %c0_37 = arith.constant 0 : index
    %c0_38 = arith.constant 0 : index
    %69 = vector.load %arg13[%c0_37, %c0_38] : memref<1x4xf32, #tpu.memory_space<vmem>>, vector<1x4xf32>
    %cst_39 = arith.constant dense<0.000000e+00> : vector<16xf32>
    %70 = vector.multi_reduction <add>, %67, %cst_39 [1] : vector<16x4xf32> to vector<16xf32>
    %71 = vector.shape_cast %70 : vector<16xf32> to vector<16x1xf32>
    %cst_40 = arith.constant 2.500000e-01 : f32
    %72 = vector.broadcast %cst_40 : f32 to vector<16x1xf32>
    %73 = arith.mulf %71, %72 : vector<16x1xf32>
    %74 = vector.broadcast %73 : vector<16x1xf32> to vector<16x4xf32>
    %75 = arith.subf %67, %74 : vector<16x4xf32>
    %76 = arith.mulf %75, %75 : vector<16x4xf32>
    %cst_41 = arith.constant dense<0.000000e+00> : vector<16xf32>
    %77 = vector.multi_reduction <add>, %76, %cst_41 [1] : vector<16x4xf32> to vector<16xf32>
    %78 = vector.shape_cast %77 : vector<16xf32> to vector<16x1xf32>
    %cst_42 = arith.constant 2.500000e-01 : f32
    %79 = vector.broadcast %cst_42 : f32 to vector<16x1xf32>
    %80 = arith.mulf %78, %79 : vector<16x1xf32>
    %cst_43 = arith.constant 0.000000e+00 : f32
    %81 = vector.broadcast %cst_43 : f32 to vector<16x1xf32>
    %82 = arith.maximumf %80, %81 : vector<16x1xf32>
    %cst_44 = arith.constant 9.99999974E-6 : f32
    %83 = vector.broadcast %cst_44 : f32 to vector<16x1xf32>
    %84 = arith.addf %82, %83 : vector<16x1xf32>
    %85 = math.rsqrt %84 : vector<16x1xf32>
    %86 = vector.broadcast %85 : vector<16x1xf32> to vector<16x4xf32>
    %87 = arith.mulf %75, %86 : vector<16x4xf32>
    %88 = vector.broadcast %68 : vector<1x4xf32> to vector<16x4xf32>
    %89 = arith.mulf %87, %88 : vector<16x4xf32>
    %90 = vector.broadcast %69 : vector<1x4xf32> to vector<16x4xf32>
    %91 = arith.addf %89, %90 : vector<16x4xf32>
    %92 = math.tanh %91 : vector<16x4xf32>
    %93 = arith.truncf %92 : vector<16x4xf32> to vector<16x4xbf16>
    %c0_45 = arith.constant 0 : index
    %c0_46 = arith.constant 0 : index
    %94 = vector.load %arg14[%c0_45, %c0_46] : memref<1x4xbf16, #tpu.memory_space<vmem>>, vector<1x4xbf16>
    %cst_47 = arith.constant dense<0.000000e+00> : vector<1x16xf32>
    %95 = tpu.matmul %94, %93, %cst_47 {dimension_numbers = #tpu.dot_dimension_numbers<[1], [1], [0], [0], [0, 0, 1, 0], [], []>} : vector<1x4xbf16>, vector<16x4xbf16>, vector<1x16xf32> -> vector<1x16xf32>
    %c0_48 = arith.constant 0 : index
    %c0_49 = arith.constant 0 : index
    %96 = vector.load %arg15[%c0_48, %c0_49] : memref<1x1xf32, #tpu.memory_space<vmem>>, vector<1x1xf32>
    %97 = vector.broadcast %96 : vector<1x1xf32> to vector<1x16xf32>
    %98 = arith.addf %95, %97 : vector<1x16xf32>
    %99 = math.tanh %98 : vector<1x16xf32>
    %100 = vector.shape_cast %99 : vector<1x16xf32> to vector<1x1x16xf32>
    %c0_50 = arith.constant 0 : index
    %c0_51 = arith.constant 0 : index
    %c0_52 = arith.constant 0 : index
    %101 = vector.load %arg16[%c0_50, %c0_51, %c0_52] : memref<1x1x16xf32, #tpu.memory_space<vmem>>, vector<1x1x16xf32>
    tpu.vector_store %arg16[%c0_50, %c0_51, %c0_52], %100 {strides = array<i32>} : memref<1x1x16xf32, #tpu.memory_space<vmem>>, vector<1x1x16xf32>,
    return
  }
  func.func @transform_0(%arg0: i32) -> (i32, i32) {
    %c0_i32 = arith.constant 0 : i32
    %c0_i32_0 = arith.constant 0 : i32
    return %arg0, %c0_i32 : i32, i32
  }
  func.func @transform_1(%arg0: i32) -> (i32, i32) {
    %c0_i32 = arith.constant 0 : i32
    %c0_i32_0 = arith.constant 0 : i32
    %c0_i32_1 = arith.constant 0 : i32
    return %c0_i32, %c0_i32_0 : i32, i32
  }
  func.func @transform_2(%arg0: i32) -> (i32, i32) {
    %c0_i32 = arith.constant 0 : i32
    %c0_i32_0 = arith.constant 0 : i32
    %c0_i32_1 = arith.constant 0 : i32
    return %c0_i32, %c0_i32_0 : i32, i32
  }
  func.func @transform_3(%arg0: i32) -> (i32, i32) {
    %c0_i32 = arith.constant 0 : i32
    %c0_i32_0 = arith.constant 0 : i32
    %c0_i32_1 = arith.constant 0 : i32
    return %c0_i32, %c0_i32_0 : i32, i32
  }
  func.func @transform_4(%arg0: i32) -> (i32, i32) {
    %c0_i32 = arith.constant 0 : i32
    %c0_i32_0 = arith.constant 0 : i32
    %c0_i32_1 = arith.constant 0 : i32
    return %c0_i32, %c0_i32_0 : i32, i32
  }
  func.func @transform_5(%arg0: i32) -> (i32, i32) {
    %c0_i32 = arith.constant 0 : i32
    %c0_i32_0 = arith.constant 0 : i32
    %c0_i32_1 = arith.constant 0 : i32
    return %c0_i32, %c0_i32_0 : i32, i32
  }
  func.func @transform_6(%arg0: i32) -> (i32, i32) {
    %c0_i32 = arith.constant 0 : i32
    %c0_i32_0 = arith.constant 0 : i32
    %c0_i32_1 = arith.constant 0 : i32
    return %c0_i32, %c0_i32_0 : i32, i32
  }
  func.func @transform_7(%arg0: i32) -> (i32, i32) {
    %c0_i32 = arith.constant 0 : i32
    %c0_i32_0 = arith.constant 0 : i32
    %c0_i32_1 = arith.constant 0 : i32
    return %c0_i32, %c0_i32_0 : i32, i32
  }
  func.func @transform_8(%arg0: i32) -> (i32, i32) {
    %c0_i32 = arith.constant 0 : i32
    %c0_i32_0 = arith.constant 0 : i32
    %c0_i32_1 = arith.constant 0 : i32
    return %c0_i32, %c0_i32_0 : i32, i32
  }
  func.func @transform_9(%arg0: i32) -> (i32, i32) {
    %c0_i32 = arith.constant 0 : i32
    %c0_i32_0 = arith.constant 0 : i32
    %c0_i32_1 = arith.constant 0 : i32
    return %c0_i32, %c0_i32_0 : i32, i32
  }
  func.func @transform_10(%arg0: i32) -> (i32, i32) {
    %c0_i32 = arith.constant 0 : i32
    %c0_i32_0 = arith.constant 0 : i32
    %c0_i32_1 = arith.constant 0 : i32
    return %c0_i32, %c0_i32_0 : i32, i32
  }
  func.func @transform_11(%arg0: i32) -> (i32, i32) {
    %c0_i32 = arith.constant 0 : i32
    %c0_i32_0 = arith.constant 0 : i32
    %c0_i32_1 = arith.constant 0 : i32
    return %c0_i32, %c0_i32_0 : i32, i32
  }
  func.func @transform_12(%arg0: i32) -> (i32, i32) {
    %c0_i32 = arith.constant 0 : i32
    %c0_i32_0 = arith.constant 0 : i32
    %c0_i32_1 = arith.constant 0 : i32
    return %c0_i32, %c0_i32_0 : i32, i32
  }
  func.func @transform_13(%arg0: i32) -> (i32, i32) {
    %c0_i32 = arith.constant 0 : i32
    %c0_i32_0 = arith.constant 0 : i32
    %c0_i32_1 = arith.constant 0 : i32
    return %c0_i32, %c0_i32_0 : i32, i32
  }
  func.func @transform_14(%arg0: i32) -> (i32, i32) {
    %c0_i32 = arith.constant 0 : i32
    %c0_i32_0 = arith.constant 0 : i32
    %c0_i32_1 = arith.constant 0 : i32
    return %c0_i32, %c0_i32_0 : i32, i32
  }
  func.func @transform_15(%arg0: i32) -> (i32, i32, i32) {
    %c0_i32 = arith.constant 0 : i32
    %c0_i32_0 = arith.constant 0 : i32
    %c0_i32_1 = arith.constant 0 : i32
    return %arg0, %c0_i32, %c0_i32_0 : i32, i32, i32
  }
}

</mosaic_0001>

<llo_original>
// kernel: linear_down_up_block.1
$region0: #{linear_down_up_block.1}
  #allocation0 [shape = 'u32[]', space=smem, size = 0x4, offset = 0x4, fixed_abs, tag = 'smem constant byte address 0x4 - core index']
  #allocation1 [shape = 'u32[144,128]{1,0:T(1,128)}', space=vmem, size = 0x12000, scoped, tag = 'internal scratch']
  #allocation2 [shape = 'f32[1,1]{1,0:T(1,128)S(1)}', space=vmem, size = 0x200, scoped, tag = 'scoped memory for linear_down_up_block.1']
  %s0 = inlined_call_operand.vmem [shape: bf16[16,32], index: 0, kind: input, shape index: {}]
  %s1 = inlined_call_operand.vmem [shape: bf16[32,16], index: 1, kind: input, shape index: {}]
  %s2 = inlined_call_operand.vmem [shape: f32[1,16], index: 2, kind: input, shape index: {}]
  %s3 = inlined_call_operand.vmem [shape: f32[1,16], index: 3, kind: input, shape index: {}]
  %s4 = inlined_call_operand.vmem [shape: f32[1,16], index: 4, kind: input, shape index: {}]
  %s5 = inlined_call_operand.vmem [shape: bf16[16,8], index: 5, kind: input, shape index: {}]
  %s6 = inlined_call_operand.vmem [shape: f32[1,8], index: 6, kind: input, shape index: {}]
  %s7 = inlined_call_operand.vmem [shape: f32[1,8], index: 7, kind: input, shape index: {}]
  %s8 = inlined_call_operand.vmem [shape: f32[1,8], index: 8, kind: input, shape index: {}]
  %s9 = inlined_call_operand.vmem [shape: bf16[8,4], index: 9, kind: input, shape index: {}]
  %s10 = inlined_call_operand.vmem [shape: f32[1,4], index: 10, kind: input, shape index: {}]
  %s11 = inlined_call_operand.vmem [shape: f32[1,4], index: 11, kind: input, shape index: {}]
  %s12 = inlined_call_operand.vmem [shape: f32[1,4], index: 12, kind: input, shape index: {}]
  %s13 = inlined_call_operand.vmem [shape: bf16[1,4], index: 13, kind: input, shape index: {}]
  %s14 = inlined_call_operand.<no memory space> [shape: f32[1,1], index: 14, kind: input, shape index: {}]
  %s15 = inlined_call_operand.vmem [shape: f32[1,1,16], index: 15, kind: output, shape index: {}]
  %s16 = sld [smem:[#allocation0]]
  $region70: #{linear_down_up_block.1} parent=0
    _
  %s18 = ssub.s32 1, %s16
  %s19 = scalar_select 0, %s18, %s16
  %v20 = vstv %s14
  %21 = vst [vmem:[#allocation2] sm:$0x1] %v20
  // Predicated region
  $region2: #{linear_down_up_block.1} parent=0 // pred_check
    _
  $region3: #{linear_down_up_block.1} parent=0 // pred_check_branch
    %23 = sbr.rel (0) target = $region5
  $region4: #{linear_down_up_block.1} parent=0 // pred_region
    _
  $region5: #{linear_down_up_block.1} parent=0 // pred_fallthru
    _
  // Predicated region
  $region6: #{linear_down_up_block.1} parent=0 // pred_check
    _
  $region7: #{linear_down_up_block.1} parent=0 // pred_check_branch
    %25 = sbr.rel (0) target = $region9
  $region8: #{linear_down_up_block.1} parent=0 // pred_region
    _
  $region9: #{linear_down_up_block.1} parent=0 // pred_fallthru
    _
  // Predicated region
  $region10: #{linear_down_up_block.1} parent=0 // pred_check
    _
  $region11: #{linear_down_up_block.1} parent=0 // pred_check_branch
    %27 = sbr.rel (0) target = $region13
  $region12: #{linear_down_up_block.1} parent=0 // pred_region
    _
  $region13: #{linear_down_up_block.1} parent=0 // pred_fallthru
    _
  // Predicated region
  $region14: #{linear_down_up_block.1} parent=0 // pred_check
    _
  $region15: #{linear_down_up_block.1} parent=0 // pred_check_branch
    %29 = sbr.rel (0) target = $region17
  $region16: #{linear_down_up_block.1} parent=0 // pred_region
    _
  $region17: #{linear_down_up_block.1} parent=0 // pred_fallthru
    _
  // Predicated region
  $region18: #{linear_down_up_block.1} parent=0 // pred_check
    _
  $region19: #{linear_down_up_block.1} parent=0 // pred_check_branch
    %31 = sbr.rel (0) target = $region21
  $region20: #{linear_down_up_block.1} parent=0 // pred_region
    _
  $region21: #{linear_down_up_block.1} parent=0 // pred_fallthru
    _
  // Predicated region
  $region22: #{linear_down_up_block.1} parent=0 // pred_check
    _
  $region23: #{linear_down_up_block.1} parent=0 // pred_check_branch
    %33 = sbr.rel (0) target = $region25
  $region24: #{linear_down_up_block.1} parent=0 // pred_region
    _
  $region25: #{linear_down_up_block.1} parent=0 // pred_fallthru
    _
  // Predicated region
  $region26: #{linear_down_up_block.1} parent=0 // pred_check
    _
  $region27: #{linear_down_up_block.1} parent=0 // pred_check_branch
    %35 = sbr.rel (0) target = $region29
  $region28: #{linear_down_up_block.1} parent=0 // pred_region
    _
  $region29: #{linear_down_up_block.1} parent=0 // pred_fallthru
    _
  // Predicated region
  $region30: #{linear_down_up_block.1} parent=0 // pred_check
    _
  $region31: #{linear_down_up_block.1} parent=0 // pred_check_branch
    %37 = sbr.rel (0) target = $region33
  $region32: #{linear_down_up_block.1} parent=0 // pred_region
    _
  $region33: #{linear_down_up_block.1} parent=0 // pred_fallthru
    _
  // Predicated region
  $region34: #{linear_down_up_block.1} parent=0 // pred_check
    _
  $region35: #{linear_down_up_block.1} parent=0 // pred_check_branch
    %39 = sbr.rel (0) target = $region37
  $region36: #{linear_down_up_block.1} parent=0 // pred_region
    _
  $region37: #{linear_down_up_block.1} parent=0 // pred_fallthru
    _
  // Predicated region
  $region38: #{linear_down_up_block.1} parent=0 // pred_check
    _
  $region39: #{linear_down_up_block.1} parent=0 // pred_check_branch
    %41 = sbr.rel (0) target = $region41
  $region40: #{linear_down_up_block.1} parent=0 // pred_region
    _
  $region41: #{linear_down_up_block.1} parent=0 // pred_fallthru
    _
  // Predicated region
  $region42: #{linear_down_up_block.1} parent=0 // pred_check
    _
  $region43: #{linear_down_up_block.1} parent=0 // pred_check_branch
    %43 = sbr.rel (0) target = $region45
  $region44: #{linear_down_up_block.1} parent=0 // pred_region
    _
  $region45: #{linear_down_up_block.1} parent=0 // pred_fallthru
    _
  // Predicated region
  $region46: #{linear_down_up_block.1} parent=0 // pred_check
    _
  $region47: #{linear_down_up_block.1} parent=0 // pred_check_branch
    %45 = sbr.rel (0) target = $region49
  $region48: #{linear_down_up_block.1} parent=0 // pred_region
    _
  $region49: #{linear_down_up_block.1} parent=0 // pred_fallthru
    _
  // Predicated region
  $region50: #{linear_down_up_block.1} parent=0 // pred_check
    _
  $region51: #{linear_down_up_block.1} parent=0 // pred_check_branch
    %47 = sbr.rel (0) target = $region53
  $region52: #{linear_down_up_block.1} parent=0 // pred_region
    _
  $region53: #{linear_down_up_block.1} parent=0 // pred_fallthru
    _
  // Predicated region
  $region54: #{linear_down_up_block.1} parent=0 // pred_check
    _
  $region55: #{linear_down_up_block.1} parent=0 // pred_check_branch
    %49 = sbr.rel (0) target = $region57
  $region56: #{linear_down_up_block.1} parent=0 // pred_region
    _
  $region57: #{linear_down_up_block.1} parent=0 // pred_fallthru
    _
  // Predicated region
  $region58: #{linear_down_up_block.1} parent=0 // pred_check
    _
  $region59: #{linear_down_up_block.1} parent=0 // pred_check_branch
    %51 = sbr.rel (0) target = $region61
  $region60: #{linear_down_up_block.1} parent=0 // pred_region
    _
  $region61: #{linear_down_up_block.1} parent=0 // pred_fallthru
    _
  %v53 = vld [vmem:[%s0] sm:$0xf]
  %v54 = vld [vmem:[%s0 + $0x4] sm:$0xf]
  %v55 = vld [vmem:[%s1] sm:$0xf]
  %v56 = vld [vmem:[%s1 + $0x4] sm:$0xf]
  %v57 = vld [vmem:[%s1 + $0x8] sm:$0xf]
  %v58 = vld [vmem:[%s1 + $0xc] sm:$0xf]
  %v59 = vld [vmem:[%s2] sm:$0x1]
  %v61 = vlaneseq
  %v62 = vshrl.u32 %v61, 7
  %v63 = vsub.s32 0, %v62
  %v64 = vrot.slane %v59, %v63
  %v68 = vunpack.c.l.b16 %v53
  %v69 = vunpack.c.l.b16 %v54
  %v70 = vpack.c.b16 %v69, %v68
  %v75 = vunpack.c.l.b16 %v55
  %v76 = vunpack.c.l.b16 %v56
  %v77 = vunpack.c.l.b16 %v57
  %v78 = vunpack.c.l.b16 %v58
  %v79 = vpack.c.b16 %v76, %v75
  %v80 = vpack.c.b16 %v78, %v77
  %vm83 = vcmask 261120
  %v85 = vsel %vm83, %v70, 0
  %87 = vmatprep.subr.bf16.mxu0 0
  %88 = vmatpush1.bf16.msra.mxu0 %v79
  %89 = vmatprep.subr.bf16.mxu0 0
  %90 = vmatpush1.bf16.msra.mxu0 %v80
  %91 = vmatprep.subr.bf16.mxu0 0
  %92 = vmatpush1.bf16.msra.mxu0 0
  %93 = vmatprep.subr.bf16.mxu0 0
  %94 = vmatpush1.bf16.msra.mxu0 0
  %95 = vmatprep.subr.bf16.mxu0 0
  %96 = vmatpush1.bf16.msra.mxu0 0
  %97 = vmatprep.subr.bf16.mxu0 0
  %98 = vmatpush1.bf16.msra.mxu0 0
  %99 = vmatprep.subr.bf16.mxu0 0
  %100 = vmatpush1.bf16.msra.mxu0 0
  %101 = vmatprep.subr.bf16.mxu0 0
  %102 = vmatpush1.bf16.msra.mxu0 0
  %103 = vmatprep.subr.bf16.mxu0 0
  %104 = vmatpush1.bf16.msra.mxu0 0
  %105 = vmatprep.subr.bf16.mxu0 0
  %106 = vmatpush1.bf16.msra.mxu0 0
  %107 = vmatprep.subr.bf16.mxu0 0
  %108 = vmatpush1.bf16.msra.mxu0 0
  %109 = vmatprep.subr.bf16.mxu0 0
  %110 = vmatpush1.bf16.msra.mxu0 0
  %111 = vmatprep.subr.bf16.mxu0 0
  %112 = vmatpush1.bf16.msra.mxu0 0
  %113 = vmatprep.subr.bf16.mxu0 0
  %114 = vmatpush1.bf16.msra.mxu0 0
  %115 = vmatprep.subr.bf16.mxu0 0
  %116 = vmatpush1.bf16.msra.mxu0 0
  %117 = vmatprep.subr.bf16.mxu0 0
  %118 = vmatpush1.bf16.msra.mxu0 0
  %119 = vmatprep.mubr.bf16.mxu0 0
  %120 = vmatmul.mubr.bf16.gmra.mrb[0].mxu0 %v85
  %v121 = vpop.f32.mrb[0].mxu0
  %v122 = vadd.f32 %v64, %v121
  %v123 = vpop.f32.mrb[0].mxu0
  %v124 = vpop.f32.mrb[0].mxu0
  %v125 = vadd.f32 %v64, %v124
  %v126 = vpop.f32.mrb[0].mxu0
  %127 = vdwg.mxu0
  %v128 = vld [vmem:[%s3] sm:$0x1]
  %v129 = vld [vmem:[%s4] sm:$0x1]
  %vm130 = vcmask 130048
  %v131 = vsel %vm130, %v122, 0.0
  %132 = vadd.xlane.f32.xlu0 %v131
  %v133 = vpop.xlane.xlu0 %132
  %v134 = vsel %vm130, %v125, 0.0
  %135 = vadd.xlane.f32.xlu0 %v134
  %v136 = vpop.xlane.xlu0 %135
  %v137 = vmul.f32 %v133, 0.0625
  %v138 = vmul.f32 %v136, 0.0625
  %v139 = vsub.f32 %v122, %v137
  %v140 = vsub.f32 %v125, %v138
  %v141 = vmul.f32 %v139, %v139
  %v142 = vmul.f32 %v140, %v140
  %v143 = vsel %vm130, %v141, 0.0
  %144 = vadd.xlane.f32.xlu0 %v143
  %v145 = vpop.xlane.xlu0 %144
  %v146 = vsel %vm130, %v142, 0.0
  %147 = vadd.xlane.f32.xlu0 %v146
  %v148 = vpop.xlane.xlu0 %147
  %v149 = vmul.f32 %v145, 0.0625
  %v150 = vmul.f32 %v148, 0.0625
  %v151 = vmax.f32 %v149, 0.0
  %v152 = vmax.f32 %v150, 0.0
  %v153 = vadd.f32 %v151, 1e-05
  %v154 = vadd.f32 %v152, 1e-05
  %v155 = vrsqrt.pop %v153
  %v156 = vrsqrt.pop %v154
  %v157 = vmul.f32 %v139, %v155
  %v158 = vmul.f32 %v140, %v156
  %v160 = vlaneseq
  %v161 = vshrl.u32 %v160, 7
  %v162 = vsub.s32 0, %v161
  %v163 = vrot.slane %v128, %v162
  %v165 = vmul.f32 %v157, %v163
  %v166 = vmul.f32 %v158, %v163
  %v168 = vlaneseq
  %v169 = vshrl.u32 %v168, 7
  %v170 = vsub.s32 0, %v169
  %v171 = vrot.slane %v129, %v170
  %v173 = vadd.f32 %v165, %v171
  %v174 = vadd.f32 %v166, %v171
  %v175 = vtanh.pop %v173
  %v176 = vtanh.pop %v174
  %v177 = vpack.c.bf16 %v176, %v175
  %v178 = vld [vmem:[%s5] sm:$0xf]
  %v179 = vld [vmem:[%s5 + $0x4] sm:$0xf]
  %v180 = vld [vmem:[%s6] sm:$0x1]
  %v182 = vlaneseq
  %v183 = vshrl.u32 %v182, 7
  %v184 = vsub.s32 0, %v183
  %v185 = vrot.slane %v180, %v184
  %v189 = vunpack.c.l.b16 %v178
  %v190 = vunpack.c.l.b16 %v179
  %v191 = vpack.c.b16 %v190, %v189
  %v194 = vsel %vm130, %v177, 0
  %196 = vmatprep.subr.bf16.mxu0 0
  %197 = vmatpush1.bf16.msra.mxu0 %v191
  %198 = vmatprep.subr.bf16.mxu0 0
  %199 = vmatpush1.bf16.msra.mxu0 0
  %200 = vmatprep.subr.bf16.mxu0 0
  %201 = vmatpush1.bf16.msra.mxu0 0
  %202 = vmatprep.subr.bf16.mxu0 0
  %203 = vmatpush1.bf16.msra.mxu0 0
  %204 = vmatprep.subr.bf16.mxu0 0
  %205 = vmatpush1.bf16.msra.mxu0 0
  %206 = vmatprep.subr.bf16.mxu0 0
  %207 = vmatpush1.bf16.msra.mxu0 0
  %208 = vmatprep.subr.bf16.mxu0 0
  %209 = vmatpush1.bf16.msra.mxu0 0
  %210 = vmatprep.subr.bf16.mxu0 0
  %211 = vmatpush1.bf16.msra.mxu0 0
  %212 = vmatprep.subr.bf16.mxu0 0
  %213 = vmatpush1.bf16.msra.mxu0 0
  %214 = vmatprep.subr.bf16.mxu0 0
  %215 = vmatpush1.bf16.msra.mxu0 0
  %216 = vmatprep.subr.bf16.mxu0 0
  %217 = vmatpush1.bf16.msra.mxu0 0
  %218 = vmatprep.subr.bf16.mxu0 0
  %219 = vmatpush1.bf16.msra.mxu0 0
  %220 = vmatprep.subr.bf16.mxu0 0
  %221 = vmatpush1.bf16.msra.mxu0 0
  %222 = vmatprep.subr.bf16.mxu0 0
  %223 = vmatpush1.bf16.msra.mxu0 0
  %224 = vmatprep.subr.bf16.mxu0 0
  %225 = vmatpush1.bf16.msra.mxu0 0
  %226 = vmatprep.subr.bf16.mxu0 0
  %227 = vmatpush1.bf16.msra.mxu0 0
  %228 = vmatprep.mubr.bf16.mxu0 0
  %229 = vmatmul.mubr.bf16.gmra.mrb[0].mxu0 %v194
  %v230 = vpop.f32.mrb[0].mxu0
  %v231 = vadd.f32 %v185, %v230
  %v232 = vpop.f32.mrb[0].mxu0
  %v233 = vpop.f32.mrb[0].mxu0
  %v234 = vadd.f32 %v185, %v233
  %v235 = vpop.f32.mrb[0].mxu0
  %236 = vdwg.mxu0
  %v237 = vld [vmem:[%s7] sm:$0x1]
  %v238 = vld [vmem:[%s8] sm:$0x1]
  %vm239 = vcmask 64512
  %v240 = vsel %vm239, %v231, 0.0
  %241 = vadd.xlane.f32.xlu0 %v240
  %v242 = vpop.xlane.xlu0 %241
  %v243 = vsel %vm239, %v234, 0.0
  %244 = vadd.xlane.f32.xlu0 %v243
  %v245 = vpop.xlane.xlu0 %244
  %v246 = vmul.f32 %v242, 0.125
  %v247 = vmul.f32 %v245, 0.125
  %v248 = vsub.f32 %v231, %v246
  %v249 = vsub.f32 %v234, %v247
  %v250 = vmul.f32 %v248, %v248
  %v251 = vmul.f32 %v249, %v249
  %v252 = vsel %vm239, %v250, 0.0
  %253 = vadd.xlane.f32.xlu0 %v252
  %v254 = vpop.xlane.xlu0 %253
  %v255 = vsel %vm239, %v251, 0.0
  %256 = vadd.xlane.f32.xlu0 %v255
  %v257 = vpop.xlane.xlu0 %256
  %v258 = vmul.f32 %v254, 0.125
  %v259 = vmul.f32 %v257, 0.125
  %v260 = vmax.f32 %v258, 0.0
  %v261 = vmax.f32 %v259, 0.0
  %v262 = vadd.f32 %v260, 1e-05
  %v263 = vadd.f32 %v261, 1e-05
  %v264 = vrsqrt.pop %v262
  %v265 = vrsqrt.pop %v263
  %v266 = vmul.f32 %v248, %v264
  %v267 = vmul.f32 %v249, %v265
  %v269 = vlaneseq
  %v270 = vshrl.u32 %v269, 7
  %v271 = vsub.s32 0, %v270
  %v272 = vrot.slane %v237, %v271
  %v274 = vmul.f32 %v266, %v272
  %v275 = vmul.f32 %v267, %v272
  %v277 = vlaneseq
  %v278 = vshrl.u32 %v277, 7
  %v279 = vsub.s32 0, %v278
  %v280 = vrot.slane %v238, %v279
  %v282 = vadd.f32 %v274, %v280
  %v283 = vadd.f32 %v275, %v280
  %v284 = vtanh.pop %v282
  %v285 = vtanh.pop %v283
  %v286 = vpack.c.bf16 %v285, %v284
  %v287 = vld [vmem:[%s9] sm:$0xf]
  %v288 = vld [vmem:[%s10] sm:$0x1]
  %v290 = vlaneseq
  %v291 = vshrl.u32 %v290, 7
  %v292 = vsub.s32 0, %v291
  %v293 = vrot.slane %v288, %v292
  %v296 = vsel %vm239, %v286, 0
  %vm298 = vcmask 1043456
  %v300 = vsel %vm298, %v287, 0
  %302 = vmatprep.subr.bf16.mxu0 0
  %303 = vmatpush1.bf16.msra.mxu0 %v300
  %304 = vmatprep.subr.bf16.mxu0 0
  %305 = vmatpush1.bf16.msra.mxu0 0
  %306 = vmatprep.subr.bf16.mxu0 0
  %307 = vmatpush1.bf16.msra.mxu0 0
  %308 = vmatprep.subr.bf16.mxu0 0
  %309 = vmatpush1.bf16.msra.mxu0 0
  %310 = vmatprep.subr.bf16.mxu0 0
  %311 = vmatpush1.bf16.msra.mxu0 0
  %312 = vmatprep.subr.bf16.mxu0 0
  %313 = vmatpush1.bf16.msra.mxu0 0
  %314 = vmatprep.subr.bf16.mxu0 0
  %315 = vmatpush1.bf16.msra.mxu0 0
  %316 = vmatprep.subr.bf16.mxu0 0
  %317 = vmatpush1.bf16.msra.mxu0 0
  %318 = vmatprep.subr.bf16.mxu0 0
  %319 = vmatpush1.bf16.msra.mxu0 0
  %320 = vmatprep.subr.bf16.mxu0 0
  %321 = vmatpush1.bf16.msra.mxu0 0
  %322 = vmatprep.subr.bf16.mxu0 0
  %323 = vmatpush1.bf16.msra.mxu0 0
  %324 = vmatprep.subr.bf16.mxu0 0
  %325 = vmatpush1.bf16.msra.mxu0 0
  %326 = vmatprep.subr.bf16.mxu0 0
  %327 = vmatpush1.bf16.msra.mxu0 0
  %328 = vmatprep.subr.bf16.mxu0 0
  %329 = vmatpush1.bf16.msra.mxu0 0
  %330 = vmatprep.subr.bf16.mxu0 0
  %331 = vmatpush1.bf16.msra.mxu0 0
  %332 = vmatprep.subr.bf16.mxu0 0
  %333 = vmatpush1.bf16.msra.mxu0 0
  %334 = vmatprep.mubr.bf16.mxu0 0
  %335 = vmatmul.mubr.bf16.gmra.mrb[0].mxu0 %v296
  %v336 = vpop.f32.mrb[0].mxu0
  %v337 = vadd.f32 %v293, %v336
  %v338 = vpop.f32.mrb[0].mxu0
  %v339 = vpop.f32.mrb[0].mxu0
  %v340 = vadd.f32 %v293, %v339
  %v341 = vpop.f32.mrb[0].mxu0
  %342 = vdwg.mxu0
  %v343 = vld [vmem:[%s11] sm:$0x1]
  %v344 = vld [vmem:[%s12] sm:$0x1]
  %vm345 = vcmask 31744
  %v346 = vsel %vm345, %v337, 0.0
  %347 = vadd.xlane.f32.xlu0 %v346
  %v348 = vpop.xlane.xlu0 %347
  %v349 = vsel %vm345, %v340, 0.0
  %350 = vadd.xlane.f32.xlu0 %v349
  %v351 = vpop.xlane.xlu0 %350
  %v352 = vmul.f32 %v348, 0.25
  %v353 = vmul.f32 %v351, 0.25
  %v354 = vsub.f32 %v337, %v352
  %v355 = vsub.f32 %v340, %v353
  %v356 = vmul.f32 %v354, %v354
  %v357 = vmul.f32 %v355, %v355
  %v358 = vsel %vm345, %v356, 0.0
  %359 = vadd.xlane.f32.xlu0 %v358
  %v360 = vpop.xlane.xlu0 %359
  %v361 = vsel %vm345, %v357, 0.0
  %362 = vadd.xlane.f32.xlu0 %v361
  %v363 = vpop.xlane.xlu0 %362
  %v364 = vmul.f32 %v360, 0.25
  %v365 = vmul.f32 %v363, 0.25
  %v366 = vmax.f32 %v364, 0.0
  %v367 = vmax.f32 %v365, 0.0
  %v368 = vadd.f32 %v366, 1e-05
  %v369 = vadd.f32 %v367, 1e-05
  %v370 = vrsqrt.pop %v368
  %v371 = vrsqrt.pop %v369
  %v372 = vmul.f32 %v354, %v370
  %v373 = vmul.f32 %v355, %v371
  %v375 = vlaneseq
  %v376 = vshrl.u32 %v375, 7
  %v377 = vsub.s32 0, %v376
  %v378 = vrot.slane %v343, %v377
  %v380 = vmul.f32 %v372, %v378
  %v381 = vmul.f32 %v373, %v378
  %v383 = vlaneseq
  %v384 = vshrl.u32 %v383, 7
  %v385 = vsub.s32 0, %v384
  %v386 = vrot.slane %v344, %v385
  %v388 = vadd.f32 %v380, %v386
  %v389 = vadd.f32 %v381, %v386
  %v390 = vtanh.pop %v388
  %v391 = vtanh.pop %v389
  %v392 = vpack.c.bf16 %v391, %v390
  %v393 = vld [vmem:[%s13] sm:$0x1]
  %v394 = vld [vmem:[#allocation2] sm:$0x1]
  %396 = vset.pattern.permute.xlu0 0
  %397 = vperm.xlu0 %396, %v394
  %v398 = vpop.permute.xlu0 %397
  %v400 = vlaneseq
  %v401 = vshrl.u32 %v400, 7
  %v402 = vsub.s32 0, %v401
  %v403 = vrot.slane %v398, %v402
  %v405 = vsel %vm345, %v393, 0
  %v408 = vsel %vm345, %v392, 0
  %410 = vmatprep.subr.bf16.mxu0 0
  %411 = vmatpush1.bf16.xpose.msra.mxu0 %v408
  %412 = vmatprep.subr.bf16.mxu0 0
  %413 = vmatpush1.bf16.xpose.msra.mxu0 0
  %414 = vmatprep.subr.bf16.mxu0 0
  %415 = vmatpush1.bf16.xpose.msra.mxu0 0
  %416 = vmatprep.subr.bf16.mxu0 0
  %417 = vmatpush1.bf16.xpose.msra.mxu0 0
  %418 = vmatprep.subr.bf16.mxu0 0
  %419 = vmatpush1.bf16.xpose.msra.mxu0 0
  %420 = vmatprep.subr.bf16.mxu0 0
  %421 = vmatpush1.bf16.xpose.msra.mxu0 0
  %422 = vmatprep.subr.bf16.mxu0 0
  %423 = vmatpush1.bf16.xpose.msra.mxu0 0
  %424 = vmatprep.subr.bf16.mxu0 0
  %425 = vmatpush1.bf16.xpose.msra.mxu0 0
  %426 = vmatprep.subr.bf16.mxu0 0
  %427 = vmatpush1.bf16.xpose.msra.mxu0 0
  %428 = vmatprep.subr.bf16.mxu0 0
  %429 = vmatpush1.bf16.xpose.msra.mxu0 0
  %430 = vmatprep.subr.bf16.mxu0 0
  %431 = vmatpush1.bf16.xpose.msra.mxu0 0
  %432 = vmatprep.subr.bf16.mxu0 0
  %433 = vmatpush1.bf16.xpose.msra.mxu0 0
  %434 = vmatprep.subr.bf16.mxu0 0
  %435 = vmatpush1.bf16.xpose.msra.mxu0 0
  %436 = vmatprep.subr.bf16.mxu0 0
  %437 = vmatpush1.bf16.xpose.msra.mxu0 0
  %438 = vmatprep.subr.bf16.mxu0 0
  %439 = vmatpush1.bf16.xpose.msra.mxu0 0
  %440 = vmatprep.subr.bf16.mxu0 0
  %441 = vmatpush1.bf16.xpose.msra.mxu0 0
  %442 = vmatprep.mubr.bf16.mxu0 0
  %443 = vmatmul.mubr.bf16.gmra.mrb[0].mxu0 %v405
  %v444 = vpop.f32.mrb[0].mxu0
  %v445 = vadd.f32 %v403, %v444
  %v446 = vpop.f32.mrb[0].mxu0
  %v447 = vpop.f32.mrb[0].mxu0
  %v448 = vpop.f32.mrb[0].mxu0
  %449 = vdwg.mxu0
  %v450 = vtanh.pop %v445
  %vm451 = vcmask 122880
  %452 = vst.msk [vmem:[%s15] sm:$0x1] %vm451, %v450
  // Predicated region
  $region62: #{linear_down_up_block.1} parent=0 // pred_check
    _
  $region63: #{linear_down_up_block.1} parent=0 // pred_check_branch
    %454 = sbr.rel (0) target = $region65
  $region64: #{linear_down_up_block.1} parent=0 // pred_region
    _
  $region65: #{linear_down_up_block.1} parent=0 // pred_fallthru
    _
  // Predicated region
  $region66: #{linear_down_up_block.1} parent=0 // pred_check
    _
  $region67: #{linear_down_up_block.1} parent=0 // pred_check_branch
    %456 = sbr.rel (0) target = $region69
  $region68: #{linear_down_up_block.1} parent=0 // pred_region
    _
  $region69: #{linear_down_up_block.1} parent=0 // pred_fallthru
    _

</llo_original>
